<compile_context>
chip_gen: v5e
topology: v5e:2x2
jax: 0.10.0
libtpu: 0.0.40
codegen_flags: <defaults>
</compile_context>

<pallas_src>
import functools
from typing import NamedTuple

import jax
import jax.numpy as jnp
import numpy as np
from jax.experimental import pallas as pl
from jax.experimental.pallas import tpu as pltpu  # noqa: F401  (whole-array blocks; no TPU-specific params needed)

DISTANCE_TRUNCATION = 10


def _round_up(x, m):
    return ((x + m - 1) // m) * m


# --------------------------- fused layout metadata --------------------------- #

class DecoderLayout(NamedTuple):
    """Static (hashable) layout of the fused block-diagonal decoder weights."""
    num_node_types: int
    num_edge_types: int
    # per-head input widths and their column offsets in the fused K dimension
    k_first: int
    k_node: int
    k_edge: int
    k_attach: int
    c_first: int
    c_node: int
    c_edge: int
    c_attach: int
    k_pad: int
    # fused hidden / output padded widths
    n1_pad: int
    n2_pad: int
    # output column offsets
    o_first: int
    o_node: int
    o_scorer: int
    o_typer: int
    o_attach: int


# --------------------- Pallas: all decoder heads, one kernel ------------------ #

def _fused_heads_kernel(x_ref, w1_ref, w2_ref, b_ref, o_ref, *, n1_pad):
    # hidden = relu(X_bf16 @ W1_bf16 + b1_f32)   (f32 accumulate, f32 bias/ReLU)
    # out    = hidden_bf16 @ W2_bf16 + b2_f32
    h = jnp.dot(x_ref[...], w1_ref[...], preferred_element_type=jnp.float32)
    h = jnp.maximum(h + b_ref[0:1, 0:n1_pad], 0.0)
    o = jnp.dot(h.astype(jnp.bfloat16), w2_ref[...],
                preferred_element_type=jnp.float32)
    o_ref[...] = o + b_ref[0:1, n1_pad:]


def _fused_heads_pallas(x, w1, w2, bias, *, n1_pad):
    r_pad = x.shape[0]
    n2_pad = w2.shape[1]
    # No grid / no BlockSpecs: every operand is a single whole-array VMEM block.
    # 4 inputs + 1 lane-dense (last dim 128) output = 5 small DMAs total.
    return pl.pallas_call(
        functools.partial(_fused_heads_kernel, n1_pad=n1_pad),
        out_shape=jax.ShapeDtypeStruct((r_pad, n2_pad), jnp.float32),
    )(x, w1, w2, bias)


# ------------------------------ Parameter init ------------------------------ #

def _init_linear(key, fan_in, fan_out):
    kw, kb = jax.random.split(key)
    w = jax.random.normal(kw, (fan_in, fan_out), jnp.float32) * (2.0 / fan_in) ** 0.5
    b = jax.random.normal(kb, (1, fan_out), jnp.float32) * 0.01
    return w, b


def _init_mlp(key, d_in, d_hidden, d_out):
    k1, k2 = jax.random.split(key)
    w1, b1 = _init_linear(k1, d_in, d_hidden)
    w2, b2 = _init_linear(k2, d_hidden, d_out)
    return {"w1": w1, "b1": b1, "w2": w2, "b2": b2}


def init_decoder_params(key, *, d_mol, d_graph, d_node, d_hidden,
                        num_node_types, num_edge_types, num_edge_features):
    """Init the five heads, then fuse them into one block-diagonal MLP (once)."""
    keys = jax.random.split(key, 8)
    # stop-edge representation width = target node rep + distance emb + remaining edge feats
    d_stop = d_node + 1 + (num_edge_features - 1)
    d_gfn = d_mol + d_graph + d_node

    H, NT, NE = d_hidden, num_node_types, num_edge_types
    k_first = d_mol
    k_node = d_mol + d_graph
    k_edge = d_gfn + d_stop
    k_attach = d_mol + d_graph + d_node

    first = _init_mlp(keys[0], k_first, H, NT)
    node = _init_mlp(keys[1], k_node, H, NT + 1)
    scorer = _init_mlp(keys[2], k_edge, H, 1)
    typer = _init_mlp(keys[3], k_edge, H, NE)
    attach = _init_mlp(keys[4], k_attach, H, 1)

    # fused-K column offsets (edge scorer + type selector share one input block)
    c_first = 0
    c_node = c_first + k_first
    c_edge = c_node + k_node
    c_attach = c_edge + k_edge
    k_total = c_attach + k_attach
    k_pad = _round_up(k_total, 128)

    # fused hidden offsets (one 64-wide block per MLP; edge has two)
    h_first, h_node, h_scorer, h_typer, h_attach = 0, H, 2 * H, 3 * H, 4 * H
    n1_pad = _round_up(5 * H, 128)

    # fused output column offsets; pad last dim to 128 for lane-dense stores
    o_first = 0
    o_node = o_first + NT
    o_scorer = o_node + NT + 1
    o_typer = o_scorer + 1
    o_attach = o_typer + NE
    n2_total = o_attach + 1
    n2_pad = _round_up(max(n2_total, 128), 128)

    # --- block-diagonal W1 / b1 ---
    w1 = jnp.zeros((k_pad, n1_pad), jnp.float32)
    w1 = w1.at[c_first:c_first + k_first, h_first:h_first + H].set(first["w1"])
    w1 = w1.at[c_node:c_node + k_node, h_node:h_node + H].set(node["w1"])
    w1 = w1.at[c_edge:c_edge + k_edge, h_scorer:h_scorer + H].set(scorer["w1"])
    w1 = w1.at[c_edge:c_edge + k_edge, h_typer:h_typer + H].set(typer["w1"])
    w1 = w1.at[c_attach:c_attach + k_attach, h_attach:h_attach + H].set(attach["w1"])

    b1 = jnp.zeros((1, n1_pad), jnp.float32)
    b1 = b1.at[:, h_first:h_first + H].set(first["b1"])
    b1 = b1.at[:, h_node:h_node + H].set(node["b1"])
    b1 = b1.at[:, h_scorer:h_scorer + H].set(scorer["b1"])
    b1 = b1.at[:, h_typer:h_typer + H].set(typer["b1"])
    b1 = b1.at[:, h_attach:h_attach + H].set(attach["b1"])

    # --- block-diagonal W2 / b2 ---
    w2 = jnp.zeros((n1_pad, n2_pad), jnp.float32)
    w2 = w2.at[h_first:h_first + H, o_first:o_first + NT].set(first["w2"])
    w2 = w2.at[h_node:h_node + H, o_node:o_node + NT + 1].set(node["w2"])
    w2 = w2.at[h_scorer:h_scorer + H, o_scorer:o_scorer + 1].set(scorer["w2"])
    w2 = w2.at[h_typer:h_typer + H, o_typer:o_typer + NE].set(typer["w2"])
    w2 = w2.at[h_attach:h_attach + H, o_attach:o_attach + 1].set(attach["w2"])

    b2 = jnp.zeros((1, n2_pad), jnp.float32)
    b2 = b2.at[:, o_first:o_first + NT].set(first["b2"])
    b2 = b2.at[:, o_node:o_node + NT + 1].set(node["b2"])
    b2 = b2.at[:, o_scorer:o_scorer + 1].set(scorer["b2"])
    b2 = b2.at[:, o_typer:o_typer + NE].set(typer["b2"])
    b2 = b2.at[:, o_attach:o_attach + 1].set(attach["b2"])

    params = {
        # bf16 weights feed the MXU at native rate; packed biases stay f32.
        "w1": w1.astype(jnp.bfloat16),
        "w2": w2.astype(jnp.bfloat16),
        "bias": jnp.concatenate([b1, b2], axis=-1),   # (1, n1_pad + n2_pad) f32
        # nn.Parameter(empty(1, d_stop)) with kaiming_normal init
        "no_more_edges_repr":
            jax.random.normal(keys[5], (1, d_stop), jnp.float32) * (2.0 / d_stop) ** 0.5,
        # nn.Embedding(distance_truncation, 1)
        "distance_embedding":
            jax.random.normal(keys[6], (DISTANCE_TRUNCATION, 1), jnp.float32),
    }
    layout = DecoderLayout(
        num_node_types=NT, num_edge_types=NE,
        k_first=k_first, k_node=k_node, k_edge=k_edge, k_attach=k_attach,
        c_first=c_first, c_node=c_node, c_edge=c_edge, c_attach=c_attach,
        k_pad=k_pad, n1_pad=n1_pad, n2_pad=n2_pad,
        o_first=o_first, o_node=o_node, o_scorer=o_scorer,
        o_typer=o_typer, o_attach=o_attach)
    raw_heads = {"first": first, "node": node, "scorer": scorer,
                 "typer": typer, "attach": attach}
    return params, layout, raw_heads


# --------------------------- input assembly (JAX glue) ------------------------ #

def _assemble_head_inputs(params, mol, graph, graphs_requiring_node_choices, nodes,
                          num_graphs_in_batch, focus_node_idx_in_batch,
                          node_to_graph_map, candidate_edge_targets,
                          candidate_edge_features, candidate_attachment_points):
    """Per-head input tensors, matching the PyTorch forward exactly."""
    # pick_first_node_type
    x_first = mol
    # pick_node_type: cat(mol[gr], graph[gr])
    x_node = jnp.concatenate([mol[graphs_requiring_node_choices],
                              graph[graphs_requiring_node_choices]], axis=-1)
    # pick_edge
    focus_rep = nodes[focus_node_idx_in_batch]
    gfn = jnp.concatenate([mol, graph, focus_rep], axis=-1)
    valid_target_to_graph = node_to_graph_map[candidate_edge_targets]
    gfn_per_cand = gfn[valid_target_to_graph]
    target_rep = nodes[candidate_edge_targets]
    # PyTorch clamps from above only; clamp the low end too so malformed negative
    # distances cannot silently gather out-of-bounds.
    trunc_dist = jnp.clip(candidate_edge_features[:, 0], 0.0,
                          float(DISTANCE_TRUNCATION - 1)).astype(jnp.int32)
    dist_emb = params["distance_embedding"][trunc_dist]                # [E, 1]
    edge_cand_rep = jnp.concatenate(
        [gfn_per_cand, target_rep, dist_emb, candidate_edge_features[:, 1:]], axis=-1)
    stop_rep = jnp.concatenate(
        [gfn, jnp.tile(params["no_more_edges_repr"], (num_graphs_in_batch, 1))], axis=-1)
    x_edge = jnp.concatenate([edge_cand_rep, stop_rep], axis=0)        # [E+G, k_edge]
    # pick_attachment_point
    orig_and_calc = jnp.concatenate([mol, graph], axis=-1)
    attach_to_graph = node_to_graph_map[candidate_attachment_points]
    x_attach = jnp.concatenate([orig_and_calc[attach_to_graph],
                                nodes[candidate_attachment_points]], axis=-1)
    return x_first, x_node, x_edge, x_attach


# ------------------------------ Decoder forward ------------------------------ #

@functools.partial(jax.jit, static_argnames=("layout", "num_graphs_in_batch"))
def mlp_decoder_forward(params, layout,
                        input_molecule_representations,
                        graph_representations,
                        graphs_requiring_node_choices,
                        node_representations,
                        num_graphs_in_batch,
                        focus_node_idx_in_batch,
                        node_to_graph_map,
                        candidate_edge_targets,
                        candidate_edge_features,
                        candidate_attachment_points):
    L = layout
    G = num_graphs_in_batch
    NC = graphs_requiring_node_choices.shape[0]
    E = candidate_edge_targets.shape[0]
    A = candidate_attachment_points.shape[0]

    x_first, x_node, x_edge, x_attach = _assemble_head_inputs(
        params, input_molecule_representations, graph_representations,
        graphs_requiring_node_choices, node_representations, G,
        focus_node_idx_in_batch, node_to_graph_map, candidate_edge_targets,
        candidate_edge_features, candidate_attachment_points)

    # Block-diagonal activation slab: rows = [first | node | edge(cand+stop) | attach];
    # each row group occupies only its head's K-column block, everything else is 0.
    r_first = 0
    r_node = r_first + G
    r_edge = r_node + NC
    r_attach = r_edge + (E + G)
    r_total = r_attach + A
    r_pad = _round_up(max(r_total, 16), 16)        # bf16 sublane-clean row count

    x = jnp.zeros((r_pad, L.k_pad), jnp.float32)
    x = x.at[r_first:r_first + G, L.c_first:L.c_first + L.k_first].set(x_first)
    x = x.at[r_node:r_node + NC, L.c_node:L.c_node + L.k_node].set(x_node)
    x = x.at[r_edge:r_edge + E + G, L.c_edge:L.c_edge + L.k_edge].set(x_edge)
    x = x.at[r_attach:r_attach + A, L.c_attach:L.c_attach + L.k_attach].set(x_attach)
    x = x.astype(jnp.bfloat16)                     # single cast per activation

    # ---- single fused Pallas kernel: all five MLP heads in two matmuls ----
    out = _fused_heads_pallas(x, params["w1"], params["w2"], params["bias"],
                              n1_pad=L.n1_pad)

    NT, NE = L.num_node_types, L.num_edge_types
    first_node_logits = out[r_first:r_first + G, L.o_first:L.o_first + NT]
    node_logits = out[r_node:r_node + NC, L.o_node:L.o_node + NT + 1]
    edge_candidate_logits = out[r_edge:r_edge + E + G, L.o_scorer]      # cands + stop
    edge_type_logits = out[r_edge:r_edge + E, L.o_typer:L.o_typer + NE]  # cands only
    attachment_point_selection_logits = out[r_attach:r_attach + A, L.o_attach]

    return (first_node_logits, node_logits, edge_candidate_logits,
            edge_type_logits, attachment_point_selection_logits)


# ----------------------------------- main ----------------------------------- #

if __name__ == "__main__":
    # Small, deterministic shapes consistent with the module's forward.
    D_MOL, D_GRAPH, D_NODE, D_HIDDEN = 64, 64, 32, 64
    NUM_NODE_TYPES, NUM_EDGE_TYPES, NUM_EDGE_FEATS = 8, 3, 4
    NUM_GRAPHS, NUM_NODES = 4, 16
    NUM_EDGE_CANDS, NUM_ATTACH = 6, 5

    key = jax.random.PRNGKey(0)
    kp, k1, k2, k3, k4 = jax.random.split(key, 5)

    params, layout, raw_heads = init_decoder_params(
        kp, d_mol=D_MOL, d_graph=D_GRAPH, d_node=D_NODE, d_hidden=D_HIDDEN,
        num_node_types=NUM_NODE_TYPES, num_edge_types=NUM_EDGE_TYPES,
        num_edge_features=NUM_EDGE_FEATS)

    input_molecule_representations = jax.random.normal(k1, (NUM_GRAPHS, D_MOL), jnp.float32)
    graph_representations = jax.random.normal(k2, (NUM_GRAPHS, D_GRAPH), jnp.float32)
    node_representations = jax.random.normal(k3, (NUM_NODES, D_NODE), jnp.float32)

    graphs_requiring_node_choices = jnp.array([0, 2, 3], dtype=jnp.int32)
    focus_node_idx_in_batch = jnp.array([0, 5, 9, 13], dtype=jnp.int32)
    node_to_graph_map = jnp.repeat(jnp.arange(NUM_GRAPHS, dtype=jnp.int32),
                                   NUM_NODES // NUM_GRAPHS)
    candidate_edge_targets = jnp.array([1, 2, 6, 7, 10, 14], dtype=jnp.int32)
    candidate_edge_features = jnp.concatenate(
        [jnp.array([[1.0], [3.0], [12.0], [2.0], [5.0], [9.0]], jnp.float32),
         jax.random.normal(k4, (NUM_EDGE_CANDS, NUM_EDGE_FEATS - 1), jnp.float32)],
        axis=-1)
    candidate_attachment_points = jnp.array([0, 3, 6, 11, 15], dtype=jnp.int32)

    outs = mlp_decoder_forward(
        params, layout,
        input_molecule_representations,
        graph_representations,
        graphs_requiring_node_choices,
        node_representations,
        NUM_GRAPHS,
        focus_node_idx_in_batch,
        node_to_graph_map,
        candidate_edge_targets,
        candidate_edge_features,
        candidate_attachment_points)
    outs = jax.block_until_ready(outs)

    (first_node_logits, node_logits, edge_candidate_logits,
     edge_type_logits, attachment_logits) = outs
    assert first_node_logits.shape == (NUM_GRAPHS, NUM_NODE_TYPES)
    assert node_logits.shape == (3, NUM_NODE_TYPES + 1)
    assert edge_candidate_logits.shape == (NUM_EDGE_CANDS + NUM_GRAPHS,)
    assert edge_type_logits.shape == (NUM_EDGE_CANDS, NUM_EDGE_TYPES)
    assert attachment_logits.shape == (NUM_ATTACH,)
    assert all(bool(jnp.all(jnp.isfinite(o))) for o in outs)

    # ---- f32 reference (un-fused heads) to validate the block-diag fusion ----
    def _ref_mlp(x, head):
        h = jnp.maximum(x @ head["w1"] + head["b1"], 0.0)
        return h @ head["w2"] + head["b2"]

    xf_r, xn_r, xe_r, xa_r = _assemble_head_inputs(
        params, input_molecule_representations, graph_representations,
        graphs_requiring_node_choices, node_representations, NUM_GRAPHS,
        focus_node_idx_in_batch, node_to_graph_map, candidate_edge_targets,
        candidate_edge_features, candidate_attachment_points)
    ref = (
        _ref_mlp(xf_r, raw_heads["first"]),
        _ref_mlp(xn_r, raw_heads["node"]),
        _ref_mlp(xe_r, raw_heads["scorer"])[:, 0],
        _ref_mlp(xe_r[:NUM_EDGE_CANDS], raw_heads["typer"]),
        _ref_mlp(xa_r, raw_heads["attach"])[:, 0],
    )
    for got, want in zip(outs, ref):
        np.testing.assert_allclose(np.asarray(got), np.asarray(want),
                                   rtol=0.1, atol=0.2)   # bf16-MXU tolerance

    print("KERNEL_OK")
</pallas_src>

<mosaic_0001>
module attributes {stable_mosaic.version = 11 : i64} {
  func.func @_fused_heads_kernel(%arg0: memref<32x640xbf16, #tpu.memory_space<vmem>>, %arg1: memref<640x384xbf16, #tpu.memory_space<vmem>>, %arg2: memref<384x128xbf16, #tpu.memory_space<vmem>>, %arg3: memref<1x512xf32, #tpu.memory_space<vmem>>, %arg4: memref<32x128xf32, #tpu.memory_space<vmem>>) attributes {dimension_semantics = [], scalar_prefetch = 0 : i64, scratch_operands = 0 : i64, tpu.core_type = #tpu.core_type<tc>} {
    %c0 = arith.constant 0 : index
    %c0_0 = arith.constant 0 : index
    %0 = vector.load %arg0[%c0, %c0_0] : memref<32x640xbf16, #tpu.memory_space<vmem>>, vector<32x640xbf16>
    %c0_1 = arith.constant 0 : index
    %c0_2 = arith.constant 0 : index
    %1 = vector.load %arg1[%c0_1, %c0_2] : memref<640x384xbf16, #tpu.memory_space<vmem>>, vector<640x384xbf16>
    %cst = arith.constant dense<0.000000e+00> : vector<32x384xf32>
    %2 = tpu.matmul %0, %1, %cst {dimension_numbers = #tpu.dot_dimension_numbers<[1], [0], [0], [1], [0, 0, 1, 1], [], []>} : vector<32x640xbf16>, vector<640x384xbf16>, vector<32x384xf32> -> vector<32x384xf32>
    %c0_3 = arith.constant 0 : index
    %c0_4 = arith.constant 0 : index
    %3 = vector.load %arg3[%c0_3, %c0_4] : memref<1x512xf32, #tpu.memory_space<vmem>>, vector<1x384xf32>
    %4 = vector.broadcast %3 : vector<1x384xf32> to vector<32x384xf32>
    %5 = arith.addf %2, %4 : vector<32x384xf32>
    %cst_5 = arith.constant 0.000000e+00 : f32
    %6 = vector.broadcast %cst_5 : f32 to vector<32x384xf32>
    %7 = arith.maximumf %5, %6 : vector<32x384xf32>
    %8 = arith.truncf %7 : vector<32x384xf32> to vector<32x384xbf16>
    %c0_6 = arith.constant 0 : index
    %c0_7 = arith.constant 0 : index
    %9 = vector.load %arg2[%c0_6, %c0_7] : memref<384x128xbf16, #tpu.memory_space<vmem>>, vector<384x128xbf16>
    %cst_8 = arith.constant dense<0.000000e+00> : vector<32x128xf32>
    %10 = tpu.matmul %8, %9, %cst_8 {dimension_numbers = #tpu.dot_dimension_numbers<[1], [0], [0], [1], [0, 0, 1, 1], [], []>} : vector<32x384xbf16>, vector<384x128xbf16>, vector<32x128xf32> -> vector<32x128xf32>
    %c0_9 = arith.constant 0 : index
    %c384 = arith.constant 384 : index
    %11 = vector.load %arg3[%c0_9, %c384] : memref<1x512xf32, #tpu.memory_space<vmem>>, vector<1x128xf32>
    %12 = vector.broadcast %11 : vector<1x128xf32> to vector<32x128xf32>
    %13 = arith.addf %10, %12 : vector<32x128xf32>
    %c0_10 = arith.constant 0 : index
    %c0_11 = arith.constant 0 : index
    %14 = vector.load %arg4[%c0_10, %c0_11] : memref<32x128xf32, #tpu.memory_space<vmem>>, vector<32x128xf32>
    tpu.vector_store %arg4[%c0_10, %c0_11], %13 {strides = array<i32>} : memref<32x128xf32, #tpu.memory_space<vmem>>, vector<32x128xf32>,
    return
  }
}

</mosaic_0001>

<llo_original>
// kernel: mlp_decoder_forward.1
$region0: #{mlp_decoder_forward.1}
  #allocation0 [shape = 'u32[]', space=smem, size = 0x4, offset = 0x4, fixed_abs, tag = 'smem constant byte address 0x4 - core index']
  #allocation1 [shape = 'u32[72,128]{1,0:T(1,128)}', space=vmem, size = 0x9000, scoped, tag = 'internal scratch']
  %s0 = inlined_call_operand.vmem [shape: bf16[32,640], index: 0, kind: input, shape index: {}]
  %s1 = inlined_call_operand.vmem [shape: bf16[640,384], index: 1, kind: input, shape index: {}]
  %s2 = inlined_call_operand.vmem [shape: bf16[384,128], index: 2, kind: input, shape index: {}]
  %s3 = inlined_call_operand.vmem [shape: f32[1,512], index: 3, kind: input, shape index: {}]
  %s4 = inlined_call_operand.vmem [shape: f32[32,128], index: 4, kind: output, shape index: {}]
  %s5 = sld [smem:[#allocation0]]
  $region26: #{mlp_decoder_forward.1} parent=0
    _
  %s7 = ssub.s32 1, %s5
  %s8 = scalar_select 0, %s7, %s5
  // Predicated region
  $region2: #{mlp_decoder_forward.1} parent=0 // pred_check
    _
  $region3: #{mlp_decoder_forward.1} parent=0 // pred_check_branch
    %10 = sbr.rel (0) target = $region5
  $region4: #{mlp_decoder_forward.1} parent=0 // pred_region
    _
  $region5: #{mlp_decoder_forward.1} parent=0 // pred_fallthru
    _
  // Predicated region
  $region6: #{mlp_decoder_forward.1} parent=0 // pred_check
    _
  $region7: #{mlp_decoder_forward.1} parent=0 // pred_check_branch
    %12 = sbr.rel (0) target = $region9
  $region8: #{mlp_decoder_forward.1} parent=0 // pred_region
    _
  $region9: #{mlp_decoder_forward.1} parent=0 // pred_fallthru
    _
  // Predicated region
  $region10: #{mlp_decoder_forward.1} parent=0 // pred_check
    _
  $region11: #{mlp_decoder_forward.1} parent=0 // pred_check_branch
    %14 = sbr.rel (0) target = $region13
  $region12: #{mlp_decoder_forward.1} parent=0 // pred_region
    _
  $region13: #{mlp_decoder_forward.1} parent=0 // pred_fallthru
    _
  // Predicated region
  $region14: #{mlp_decoder_forward.1} parent=0 // pred_check
    _
  $region15: #{mlp_decoder_forward.1} parent=0 // pred_check_branch
    %16 = sbr.rel (0) target = $region17
  $region16: #{mlp_decoder_forward.1} parent=0 // pred_region
    _
  $region17: #{mlp_decoder_forward.1} parent=0 // pred_fallthru
    _
  %v17 = vld [vmem:[%s0] sm:$0xff]
  %v18 = vld [vmem:[%s0 + $0x8] sm:$0xff]
  %v19 = vld [vmem:[%s0 + $0x10] sm:$0xf]
  %v20 = vld [vmem:[%s0 + $0x14] sm:$0xff]
  %v21 = vld [vmem:[%s0 + $0x1c] sm:$0xff]
  %v22 = vld [vmem:[%s0 + $0x24] sm:$0xf]
  %v23 = vld [vmem:[%s0 + $0x28] sm:$0xff]
  %v24 = vld [vmem:[%s0 + $0x30] sm:$0xff]
  %v25 = vld [vmem:[%s0 + $0x38] sm:$0xf]
  %v26 = vld [vmem:[%s0 + $0x3c] sm:$0xff]
  %v27 = vld [vmem:[%s0 + $0x44] sm:$0xff]
  %v28 = vld [vmem:[%s0 + $0x4c] sm:$0xf]
  %v29 = vld [vmem:[%s1] sm:$0xff]
  %v30 = vld [vmem:[%s1 + $0x8] sm:$0xf]
  %v31 = vld [vmem:[%s1 + $0xc] sm:$0xff]
  %v32 = vld [vmem:[%s1 + $0x14] sm:$0xf]
  %v33 = vld [vmem:[%s1 + $0x18] sm:$0xff]
  %v34 = vld [vmem:[%s1 + $0x20] sm:$0xf]
  %v35 = vld [vmem:[%s1 + $0x24] sm:$0xff]
  %v36 = vld [vmem:[%s1 + $0x2c] sm:$0xf]
  %v37 = vld [vmem:[%s1 + $0x30] sm:$0xff]
  %v38 = vld [vmem:[%s1 + $0x38] sm:$0xf]
  %v39 = vld [vmem:[%s1 + $0x3c] sm:$0xff]
  %v40 = vld [vmem:[%s1 + $0x44] sm:$0xf]
  %v41 = vld [vmem:[%s1 + $0x48] sm:$0xff]
  %v42 = vld [vmem:[%s1 + $0x50] sm:$0xf]
  %v43 = vld [vmem:[%s1 + $0x54] sm:$0xff]
  %v44 = vld [vmem:[%s1 + $0x5c] sm:$0xf]
  %v45 = vld [vmem:[%s1 + $0x60] sm:$0xff]
  %v46 = vld [vmem:[%s1 + $0x68] sm:$0xf]
  %v47 = vld [vmem:[%s1 + $0x6c] sm:$0xff]
  %v48 = vld [vmem:[%s1 + $0x74] sm:$0xf]
  %v49 = vld [vmem:[%s1 + $0x78] sm:$0xff]
  %v50 = vld [vmem:[%s1 + $0x80] sm:$0xf]
  %v51 = vld [vmem:[%s1 + $0x84] sm:$0xff]
  %v52 = vld [vmem:[%s1 + $0x8c] sm:$0xf]
  %v53 = vld [vmem:[%s1 + $0x90] sm:$0xff]
  %v54 = vld [vmem:[%s1 + $0x98] sm:$0xf]
  %v55 = vld [vmem:[%s1 + $0x9c] sm:$0xff]
  %v56 = vld [vmem:[%s1 + $0xa4] sm:$0xf]
  %v57 = vld [vmem:[%s1 + $0xa8] sm:$0xff]
  %v58 = vld [vmem:[%s1 + $0xb0] sm:$0xf]
  %v59 = vld [vmem:[%s1 + $0xb4] sm:$0xff]
  %v60 = vld [vmem:[%s1 + $0xbc] sm:$0xf]
  %v61 = vld [vmem:[%s1 + $0xc0] sm:$0xff]
  %v62 = vld [vmem:[%s1 + $0xc8] sm:$0xf]
  %v63 = vld [vmem:[%s1 + $0xcc] sm:$0xff]
  %v64 = vld [vmem:[%s1 + $0xd4] sm:$0xf]
  %v65 = vld [vmem:[%s1 + $0xd8] sm:$0xff]
  %v66 = vld [vmem:[%s1 + $0xe0] sm:$0xf]
  %v67 = vld [vmem:[%s1 + $0xe4] sm:$0xff]
  %v68 = vld [vmem:[%s1 + $0xec] sm:$0xf]
  %v69 = vld [vmem:[%s1 + $0xf0] sm:$0xff]
  %v70 = vld [vmem:[%s1 + $0xf8] sm:$0xf]
  %v71 = vld [vmem:[%s1 + $0xfc] sm:$0xff]
  %v72 = vld [vmem:[%s1 + $0x104] sm:$0xf]
  %v73 = vld [vmem:[%s1 + $0x108] sm:$0xff]
  %v74 = vld [vmem:[%s1 + $0x110] sm:$0xf]
  %v75 = vld [vmem:[%s1 + $0x114] sm:$0xff]
  %v76 = vld [vmem:[%s1 + $0x11c] sm:$0xf]
  %v77 = vld [vmem:[%s1 + $0x120] sm:$0xff]
  %v78 = vld [vmem:[%s1 + $0x128] sm:$0xf]
  %v79 = vld [vmem:[%s1 + $0x12c] sm:$0xff]
  %v80 = vld [vmem:[%s1 + $0x134] sm:$0xf]
  %v81 = vld [vmem:[%s1 + $0x138] sm:$0xff]
  %v82 = vld [vmem:[%s1 + $0x140] sm:$0xf]
  %v83 = vld [vmem:[%s1 + $0x144] sm:$0xff]
  %v84 = vld [vmem:[%s1 + $0x14c] sm:$0xf]
  %v85 = vld [vmem:[%s1 + $0x150] sm:$0xff]
  %v86 = vld [vmem:[%s1 + $0x158] sm:$0xf]
  %v87 = vld [vmem:[%s1 + $0x15c] sm:$0xff]
  %v88 = vld [vmem:[%s1 + $0x164] sm:$0xf]
  %v89 = vld [vmem:[%s1 + $0x168] sm:$0xff]
  %v90 = vld [vmem:[%s1 + $0x170] sm:$0xf]
  %v91 = vld [vmem:[%s1 + $0x174] sm:$0xff]
  %v92 = vld [vmem:[%s1 + $0x17c] sm:$0xf]
  %v93 = vld [vmem:[%s1 + $0x180] sm:$0xff]
  %v94 = vld [vmem:[%s1 + $0x188] sm:$0xf]
  %v95 = vld [vmem:[%s1 + $0x18c] sm:$0xff]
  %v96 = vld [vmem:[%s1 + $0x194] sm:$0xf]
  %v97 = vld [vmem:[%s1 + $0x198] sm:$0xff]
  %v98 = vld [vmem:[%s1 + $0x1a0] sm:$0xf]
  %v99 = vld [vmem:[%s1 + $0x1a4] sm:$0xff]
  %v100 = vld [vmem:[%s1 + $0x1ac] sm:$0xf]
  %v101 = vld [vmem:[%s1 + $0x1b0] sm:$0xff]
  %v102 = vld [vmem:[%s1 + $0x1b8] sm:$0xf]
  %v103 = vld [vmem:[%s1 + $0x1bc] sm:$0xff]
  %v104 = vld [vmem:[%s1 + $0x1c4] sm:$0xf]
  %v105 = vld [vmem:[%s1 + $0x1c8] sm:$0xff]
  %v106 = vld [vmem:[%s1 + $0x1d0] sm:$0xf]
  %v107 = vld [vmem:[%s1 + $0x1d4] sm:$0xff]
  %v108 = vld [vmem:[%s1 + $0x1dc] sm:$0xf]
  %v109 = vld [vmem:[%s1 + $0x1e0] sm:$0xff]
  %v110 = vld [vmem:[%s1 + $0x1e8] sm:$0xf]
  %v111 = vld [vmem:[%s1 + $0x1ec] sm:$0xff]
  %v112 = vld [vmem:[%s1 + $0x1f4] sm:$0xf]
  %v113 = vld [vmem:[%s1 + $0x1f8] sm:$0xff]
  %v114 = vld [vmem:[%s1 + $0x200] sm:$0xf]
  %v115 = vld [vmem:[%s1 + $0x204] sm:$0xff]
  %v116 = vld [vmem:[%s1 + $0x20c] sm:$0xf]
  %v117 = vld [vmem:[%s1 + $0x210] sm:$0xff]
  %v118 = vld [vmem:[%s1 + $0x218] sm:$0xf]
  %v119 = vld [vmem:[%s1 + $0x21c] sm:$0xff]
  %v120 = vld [vmem:[%s1 + $0x224] sm:$0xf]
  %v121 = vld [vmem:[%s1 + $0x228] sm:$0xff]
  %v122 = vld [vmem:[%s1 + $0x230] sm:$0xf]
  %v123 = vld [vmem:[%s1 + $0x234] sm:$0xff]
  %v124 = vld [vmem:[%s1 + $0x23c] sm:$0xf]
  %v125 = vld [vmem:[%s1 + $0x240] sm:$0xff]
  %v126 = vld [vmem:[%s1 + $0x248] sm:$0xf]
  %v127 = vld [vmem:[%s1 + $0x24c] sm:$0xff]
  %v128 = vld [vmem:[%s1 + $0x254] sm:$0xf]
  %v129 = vld [vmem:[%s1 + $0x258] sm:$0xff]
  %v130 = vld [vmem:[%s1 + $0x260] sm:$0xf]
  %v131 = vld [vmem:[%s1 + $0x264] sm:$0xff]
  %v132 = vld [vmem:[%s1 + $0x26c] sm:$0xf]
  %v133 = vld [vmem:[%s1 + $0x270] sm:$0xff]
  %v134 = vld [vmem:[%s1 + $0x278] sm:$0xf]
  %v135 = vld [vmem:[%s1 + $0x27c] sm:$0xff]
  %v136 = vld [vmem:[%s1 + $0x284] sm:$0xf]
  %v137 = vld [vmem:[%s1 + $0x288] sm:$0xff]
  %v138 = vld [vmem:[%s1 + $0x290] sm:$0xf]
  %v139 = vld [vmem:[%s1 + $0x294] sm:$0xff]
  %v140 = vld [vmem:[%s1 + $0x29c] sm:$0xf]
  %v141 = vld [vmem:[%s1 + $0x2a0] sm:$0xff]
  %v142 = vld [vmem:[%s1 + $0x2a8] sm:$0xf]
  %v143 = vld [vmem:[%s1 + $0x2ac] sm:$0xff]
  %v144 = vld [vmem:[%s1 + $0x2b4] sm:$0xf]
  %v145 = vld [vmem:[%s1 + $0x2b8] sm:$0xff]
  %v146 = vld [vmem:[%s1 + $0x2c0] sm:$0xf]
  %v147 = vld [vmem:[%s1 + $0x2c4] sm:$0xff]
  %v148 = vld [vmem:[%s1 + $0x2cc] sm:$0xf]
  %v149 = vld [vmem:[%s1 + $0x2d0] sm:$0xff]
  %v150 = vld [vmem:[%s1 + $0x2d8] sm:$0xf]
  %v151 = vld [vmem:[%s1 + $0x2dc] sm:$0xff]
  %v152 = vld [vmem:[%s1 + $0x2e4] sm:$0xf]
  %v153 = vld [vmem:[%s1 + $0x2e8] sm:$0xff]
  %v154 = vld [vmem:[%s1 + $0x2f0] sm:$0xf]
  %v155 = vld [vmem:[%s1 + $0x2f4] sm:$0xff]
  %v156 = vld [vmem:[%s1 + $0x2fc] sm:$0xf]
  %v157 = vld [vmem:[%s1 + $0x300] sm:$0xff]
  %v158 = vld [vmem:[%s1 + $0x308] sm:$0xf]
  %v159 = vld [vmem:[%s1 + $0x30c] sm:$0xff]
  %v160 = vld [vmem:[%s1 + $0x314] sm:$0xf]
  %v161 = vld [vmem:[%s1 + $0x318] sm:$0xff]
  %v162 = vld [vmem:[%s1 + $0x320] sm:$0xf]
  %v163 = vld [vmem:[%s1 + $0x324] sm:$0xff]
  %v164 = vld [vmem:[%s1 + $0x32c] sm:$0xf]
  %v165 = vld [vmem:[%s1 + $0x330] sm:$0xff]
  %v166 = vld [vmem:[%s1 + $0x338] sm:$0xf]
  %v167 = vld [vmem:[%s1 + $0x33c] sm:$0xff]
  %v168 = vld [vmem:[%s1 + $0x344] sm:$0xf]
  %v169 = vld [vmem:[%s1 + $0x348] sm:$0xff]
  %v170 = vld [vmem:[%s1 + $0x350] sm:$0xf]
  %v171 = vld [vmem:[%s1 + $0x354] sm:$0xff]
  %v172 = vld [vmem:[%s1 + $0x35c] sm:$0xf]
  %v173 = vld [vmem:[%s1 + $0x360] sm:$0xff]
  %v174 = vld [vmem:[%s1 + $0x368] sm:$0xf]
  %v175 = vld [vmem:[%s1 + $0x36c] sm:$0xff]
  %v176 = vld [vmem:[%s1 + $0x374] sm:$0xf]
  %v177 = vld [vmem:[%s1 + $0x378] sm:$0xff]
  %v178 = vld [vmem:[%s1 + $0x380] sm:$0xf]
  %v179 = vld [vmem:[%s1 + $0x384] sm:$0xff]
  %v180 = vld [vmem:[%s1 + $0x38c] sm:$0xf]
  %v181 = vld [vmem:[%s1 + $0x390] sm:$0xff]
  %v182 = vld [vmem:[%s1 + $0x398] sm:$0xf]
  %v183 = vld [vmem:[%s1 + $0x39c] sm:$0xff]
  %v184 = vld [vmem:[%s1 + $0x3a4] sm:$0xf]
  %v185 = vld [vmem:[%s1 + $0x3a8] sm:$0xff]
  %v186 = vld [vmem:[%s1 + $0x3b0] sm:$0xf]
  %v187 = vld [vmem:[%s1 + $0x3b4] sm:$0xff]
  %v188 = vld [vmem:[%s1 + $0x3bc] sm:$0xf]
  %v189 = vld [vmem:[%s3] sm:$0x7]
  %v191 = vperm.slane %v189, 0
  %v192 = vperm.slane %v189, 1
  %v193 = vperm.slane %v189, 2
  %v209 = vunpack.c.l.b16 %v17
  %v210 = vunpack.c.h.b16 %v17
  %v211 = vunpack.c.l.b16 %v18
  %v212 = vunpack.c.h.b16 %v18
  %v213 = vunpack.c.l.b16 %v19
  %v214 = vunpack.c.l.b16 %v20
  %v215 = vunpack.c.h.b16 %v20
  %v216 = vunpack.c.l.b16 %v21
  %v217 = vunpack.c.h.b16 %v21
  %v218 = vunpack.c.l.b16 %v22
  %v219 = vunpack.c.l.b16 %v23
  %v220 = vunpack.c.h.b16 %v23
  %v221 = vunpack.c.l.b16 %v24
  %v222 = vunpack.c.h.b16 %v24
  %v223 = vunpack.c.l.b16 %v25
  %v224 = vunpack.c.l.b16 %v26
  %v225 = vunpack.c.h.b16 %v26
  %v226 = vunpack.c.l.b16 %v27
  %v227 = vunpack.c.h.b16 %v27
  %v228 = vunpack.c.l.b16 %v28
  %v229 = vpack.c.b16 %v214, %v209
  %v230 = vpack.c.b16 %v215, %v210
  %v231 = vpack.c.b16 %v216, %v211
  %v232 = vpack.c.b16 %v217, %v212
  %v233 = vpack.c.b16 %v218, %v213
  %v234 = vpack.c.b16 %v224, %v219
  %v235 = vpack.c.b16 %v225, %v220
  %v236 = vpack.c.b16 %v226, %v221
  %v237 = vpack.c.b16 %v227, %v222
  %v238 = vpack.c.b16 %v228, %v223
  %v409 = vunpack.c.l.b16 %v29
  %v410 = vunpack.c.h.b16 %v29
  %v411 = vunpack.c.l.b16 %v30
  %v412 = vunpack.c.l.b16 %v31
  %v413 = vunpack.c.h.b16 %v31
  %v414 = vunpack.c.l.b16 %v32
  %v415 = vunpack.c.l.b16 %v33
  %v416 = vunpack.c.h.b16 %v33
  %v417 = vunpack.c.l.b16 %v34
  %v418 = vunpack.c.l.b16 %v35
  %v419 = vunpack.c.h.b16 %v35
  %v420 = vunpack.c.l.b16 %v36
  %v421 = vunpack.c.l.b16 %v37
  %v422 = vunpack.c.h.b16 %v37
  %v423 = vunpack.c.l.b16 %v38
  %v424 = vunpack.c.l.b16 %v39
  %v425 = vunpack.c.h.b16 %v39
  %v426 = vunpack.c.l.b16 %v40
  %v427 = vunpack.c.l.b16 %v41
  %v428 = vunpack.c.h.b16 %v41
  %v429 = vunpack.c.l.b16 %v42
  %v430 = vunpack.c.l.b16 %v43
  %v431 = vunpack.c.h.b16 %v43
  %v432 = vunpack.c.l.b16 %v44
  %v433 = vunpack.c.l.b16 %v45
  %v434 = vunpack.c.h.b16 %v45
  %v435 = vunpack.c.l.b16 %v46
  %v436 = vunpack.c.l.b16 %v47
  %v437 = vunpack.c.h.b16 %v47
  %v438 = vunpack.c.l.b16 %v48
  %v439 = vunpack.c.l.b16 %v49
  %v440 = vunpack.c.h.b16 %v49
  %v441 = vunpack.c.l.b16 %v50
  %v442 = vunpack.c.l.b16 %v51
  %v443 = vunpack.c.h.b16 %v51
  %v444 = vunpack.c.l.b16 %v52
  %v445 = vunpack.c.l.b16 %v53
  %v446 = vunpack.c.h.b16 %v53
  %v447 = vunpack.c.l.b16 %v54
  %v448 = vunpack.c.l.b16 %v55
  %v449 = vunpack.c.h.b16 %v55
  %v450 = vunpack.c.l.b16 %v56
  %v451 = vunpack.c.l.b16 %v57
  %v452 = vunpack.c.h.b16 %v57
  %v453 = vunpack.c.l.b16 %v58
  %v454 = vunpack.c.l.b16 %v59
  %v455 = vunpack.c.h.b16 %v59
  %v456 = vunpack.c.l.b16 %v60
  %v457 = vunpack.c.l.b16 %v61
  %v458 = vunpack.c.h.b16 %v61
  %v459 = vunpack.c.l.b16 %v62
  %v460 = vunpack.c.l.b16 %v63
  %v461 = vunpack.c.h.b16 %v63
  %v462 = vunpack.c.l.b16 %v64
  %v463 = vunpack.c.l.b16 %v65
  %v464 = vunpack.c.h.b16 %v65
  %v465 = vunpack.c.l.b16 %v66
  %v466 = vunpack.c.l.b16 %v67
  %v467 = vunpack.c.h.b16 %v67
  %v468 = vunpack.c.l.b16 %v68
  %v469 = vunpack.c.l.b16 %v69
  %v470 = vunpack.c.h.b16 %v69
  %v471 = vunpack.c.l.b16 %v70
  %v472 = vunpack.c.l.b16 %v71
  %v473 = vunpack.c.h.b16 %v71
  %v474 = vunpack.c.l.b16 %v72
  %v475 = vunpack.c.l.b16 %v73
  %v476 = vunpack.c.h.b16 %v73
  %v477 = vunpack.c.l.b16 %v74
  %v478 = vunpack.c.l.b16 %v75
  %v479 = vunpack.c.h.b16 %v75
  %v480 = vunpack.c.l.b16 %v76
  %v481 = vunpack.c.l.b16 %v77
  %v482 = vunpack.c.h.b16 %v77
  %v483 = vunpack.c.l.b16 %v78
  %v484 = vunpack.c.l.b16 %v79
  %v485 = vunpack.c.h.b16 %v79
  %v486 = vunpack.c.l.b16 %v80
  %v487 = vunpack.c.l.b16 %v81
  %v488 = vunpack.c.h.b16 %v81
  %v489 = vunpack.c.l.b16 %v82
  %v490 = vunpack.c.l.b16 %v83
  %v491 = vunpack.c.h.b16 %v83
  %v492 = vunpack.c.l.b16 %v84
  %v493 = vunpack.c.l.b16 %v85
  %v494 = vunpack.c.h.b16 %v85
  %v495 = vunpack.c.l.b16 %v86
  %v496 = vunpack.c.l.b16 %v87
  %v497 = vunpack.c.h.b16 %v87
  %v498 = vunpack.c.l.b16 %v88
  %v499 = vunpack.c.l.b16 %v89
  %v500 = vunpack.c.h.b16 %v89
  %v501 = vunpack.c.l.b16 %v90
  %v502 = vunpack.c.l.b16 %v91
  %v503 = vunpack.c.h.b16 %v91
  %v504 = vunpack.c.l.b16 %v92
  %v505 = vunpack.c.l.b16 %v93
  %v506 = vunpack.c.h.b16 %v93
  %v507 = vunpack.c.l.b16 %v94
  %v508 = vunpack.c.l.b16 %v95
  %v509 = vunpack.c.h.b16 %v95
  %v510 = vunpack.c.l.b16 %v96
  %v511 = vunpack.c.l.b16 %v97
  %v512 = vunpack.c.h.b16 %v97
  %v513 = vunpack.c.l.b16 %v98
  %v514 = vunpack.c.l.b16 %v99
  %v515 = vunpack.c.h.b16 %v99
  %v516 = vunpack.c.l.b16 %v100
  %v517 = vunpack.c.l.b16 %v101
  %v518 = vunpack.c.h.b16 %v101
  %v519 = vunpack.c.l.b16 %v102
  %v520 = vunpack.c.l.b16 %v103
  %v521 = vunpack.c.h.b16 %v103
  %v522 = vunpack.c.l.b16 %v104
  %v523 = vunpack.c.l.b16 %v105
  %v524 = vunpack.c.h.b16 %v105
  %v525 = vunpack.c.l.b16 %v106
  %v526 = vunpack.c.l.b16 %v107
  %v527 = vunpack.c.h.b16 %v107
  %v528 = vunpack.c.l.b16 %v108
  %v529 = vunpack.c.l.b16 %v109
  %v530 = vunpack.c.h.b16 %v109
  %v531 = vunpack.c.l.b16 %v110
  %v532 = vunpack.c.l.b16 %v111
  %v533 = vunpack.c.h.b16 %v111
  %v534 = vunpack.c.l.b16 %v112
  %v535 = vunpack.c.l.b16 %v113
  %v536 = vunpack.c.h.b16 %v113
  %v537 = vunpack.c.l.b16 %v114
  %v538 = vunpack.c.l.b16 %v115
  %v539 = vunpack.c.h.b16 %v115
  %v540 = vunpack.c.l.b16 %v116
  %v541 = vunpack.c.l.b16 %v117
  %v542 = vunpack.c.h.b16 %v117
  %v543 = vunpack.c.l.b16 %v118
  %v544 = vunpack.c.l.b16 %v119
  %v545 = vunpack.c.h.b16 %v119
  %v546 = vunpack.c.l.b16 %v120
  %v547 = vunpack.c.l.b16 %v121
  %v548 = vunpack.c.h.b16 %v121
  %v549 = vunpack.c.l.b16 %v122
  %v550 = vunpack.c.l.b16 %v123
  %v551 = vunpack.c.h.b16 %v123
  %v552 = vunpack.c.l.b16 %v124
  %v553 = vunpack.c.l.b16 %v125
  %v554 = vunpack.c.h.b16 %v125
  %v555 = vunpack.c.l.b16 %v126
  %v556 = vunpack.c.l.b16 %v127
  %v557 = vunpack.c.h.b16 %v127
  %v558 = vunpack.c.l.b16 %v128
  %v559 = vunpack.c.l.b16 %v129
  %v560 = vunpack.c.h.b16 %v129
  %v561 = vunpack.c.l.b16 %v130
  %v562 = vunpack.c.l.b16 %v131
  %v563 = vunpack.c.h.b16 %v131
  %v564 = vunpack.c.l.b16 %v132
  %v565 = vunpack.c.l.b16 %v133
  %v566 = vunpack.c.h.b16 %v133
  %v567 = vunpack.c.l.b16 %v134
  %v568 = vunpack.c.l.b16 %v135
  %v569 = vunpack.c.h.b16 %v135
  %v570 = vunpack.c.l.b16 %v136
  %v571 = vunpack.c.l.b16 %v137
  %v572 = vunpack.c.h.b16 %v137
  %v573 = vunpack.c.l.b16 %v138
  %v574 = vunpack.c.l.b16 %v139
  %v575 = vunpack.c.h.b16 %v139
  %v576 = vunpack.c.l.b16 %v140
  %v577 = vunpack.c.l.b16 %v141
  %v578 = vunpack.c.h.b16 %v141
  %v579 = vunpack.c.l.b16 %v142
  %v580 = vunpack.c.l.b16 %v143
  %v581 = vunpack.c.h.b16 %v143
  %v582 = vunpack.c.l.b16 %v144
  %v583 = vunpack.c.l.b16 %v145
  %v584 = vunpack.c.h.b16 %v145
  %v585 = vunpack.c.l.b16 %v146
  %v586 = vunpack.c.l.b16 %v147
  %v587 = vunpack.c.h.b16 %v147
  %v588 = vunpack.c.l.b16 %v148
  %v589 = vunpack.c.l.b16 %v149
  %v590 = vunpack.c.h.b16 %v149
  %v591 = vunpack.c.l.b16 %v150
  %v592 = vunpack.c.l.b16 %v151
  %v593 = vunpack.c.h.b16 %v151
  %v594 = vunpack.c.l.b16 %v152
  %v595 = vunpack.c.l.b16 %v153
  %v596 = vunpack.c.h.b16 %v153
  %v597 = vunpack.c.l.b16 %v154
  %v598 = vunpack.c.l.b16 %v155
  %v599 = vunpack.c.h.b16 %v155
  %v600 = vunpack.c.l.b16 %v156
  %v601 = vunpack.c.l.b16 %v157
  %v602 = vunpack.c.h.b16 %v157
  %v603 = vunpack.c.l.b16 %v158
  %v604 = vunpack.c.l.b16 %v159
  %v605 = vunpack.c.h.b16 %v159
  %v606 = vunpack.c.l.b16 %v160
  %v607 = vunpack.c.l.b16 %v161
  %v608 = vunpack.c.h.b16 %v161
  %v609 = vunpack.c.l.b16 %v162
  %v610 = vunpack.c.l.b16 %v163
  %v611 = vunpack.c.h.b16 %v163
  %v612 = vunpack.c.l.b16 %v164
  %v613 = vunpack.c.l.b16 %v165
  %v614 = vunpack.c.h.b16 %v165
  %v615 = vunpack.c.l.b16 %v166
  %v616 = vunpack.c.l.b16 %v167
  %v617 = vunpack.c.h.b16 %v167
  %v618 = vunpack.c.l.b16 %v168
  %v619 = vunpack.c.l.b16 %v169
  %v620 = vunpack.c.h.b16 %v169
  %v621 = vunpack.c.l.b16 %v170
  %v622 = vunpack.c.l.b16 %v171
  %v623 = vunpack.c.h.b16 %v171
  %v624 = vunpack.c.l.b16 %v172
  %v625 = vunpack.c.l.b16 %v173
  %v626 = vunpack.c.h.b16 %v173
  %v627 = vunpack.c.l.b16 %v174
  %v628 = vunpack.c.l.b16 %v175
  %v629 = vunpack.c.h.b16 %v175
  %v630 = vunpack.c.l.b16 %v176
  %v631 = vunpack.c.l.b16 %v177
  %v632 = vunpack.c.h.b16 %v177
  %v633 = vunpack.c.l.b16 %v178
  %v634 = vunpack.c.l.b16 %v179
  %v635 = vunpack.c.h.b16 %v179
  %v636 = vunpack.c.l.b16 %v180
  %v637 = vunpack.c.l.b16 %v181
  %v638 = vunpack.c.h.b16 %v181
  %v639 = vunpack.c.l.b16 %v182
  %v640 = vunpack.c.l.b16 %v183
  %v641 = vunpack.c.h.b16 %v183
  %v642 = vunpack.c.l.b16 %v184
  %v643 = vunpack.c.l.b16 %v185
  %v644 = vunpack.c.h.b16 %v185
  %v645 = vunpack.c.l.b16 %v186
  %v646 = vunpack.c.l.b16 %v187
  %v647 = vunpack.c.h.b16 %v187
  %v648 = vunpack.c.l.b16 %v188
  %v649 = vpack.c.b16 %v412, %v409
  %v650 = vpack.c.b16 %v413, %v410
  %v651 = vpack.c.b16 %v414, %v411
  %v652 = vpack.c.b16 %v418, %v415
  %v653 = vpack.c.b16 %v419, %v416
  %v654 = vpack.c.b16 %v420, %v417
  %v655 = vpack.c.b16 %v424, %v421
  %v656 = vpack.c.b16 %v425, %v422
  %v657 = vpack.c.b16 %v426, %v423
  %v658 = vpack.c.b16 %v430, %v427
  %v659 = vpack.c.b16 %v431, %v428
  %v660 = vpack.c.b16 %v432, %v429
  %v661 = vpack.c.b16 %v436, %v433
  %v662 = vpack.c.b16 %v437, %v434
  %v663 = vpack.c.b16 %v438, %v435
  %v664 = vpack.c.b16 %v442, %v439
  %v665 = vpack.c.b16 %v443, %v440
  %v666 = vpack.c.b16 %v444, %v441
  %v667 = vpack.c.b16 %v448, %v445
  %v668 = vpack.c.b16 %v449, %v446
  %v669 = vpack.c.b16 %v450, %v447
  %v670 = vpack.c.b16 %v454, %v451
  %v671 = vpack.c.b16 %v455, %v452
  %v672 = vpack.c.b16 %v456, %v453
  %v673 = vpack.c.b16 %v460, %v457
  %v674 = vpack.c.b16 %v461, %v458
  %v675 = vpack.c.b16 %v462, %v459
  %v676 = vpack.c.b16 %v466, %v463
  %v677 = vpack.c.b16 %v467, %v464
  %v678 = vpack.c.b16 %v468, %v465
  %v679 = vpack.c.b16 %v472, %v469
  %v680 = vpack.c.b16 %v473, %v470
  %v681 = vpack.c.b16 %v474, %v471
  %v682 = vpack.c.b16 %v478, %v475
  %v683 = vpack.c.b16 %v479, %v476
  %v684 = vpack.c.b16 %v480, %v477
  %v685 = vpack.c.b16 %v484, %v481
  %v686 = vpack.c.b16 %v485, %v482
  %v687 = vpack.c.b16 %v486, %v483
  %v688 = vpack.c.b16 %v490, %v487
  %v689 = vpack.c.b16 %v491, %v488
  %v690 = vpack.c.b16 %v492, %v489
  %v691 = vpack.c.b16 %v496, %v493
  %v692 = vpack.c.b16 %v497, %v494
  %v693 = vpack.c.b16 %v498, %v495
  %v694 = vpack.c.b16 %v502, %v499
  %v695 = vpack.c.b16 %v503, %v500
  %v696 = vpack.c.b16 %v504, %v501
  %v697 = vpack.c.b16 %v508, %v505
  %v698 = vpack.c.b16 %v509, %v506
  %v699 = vpack.c.b16 %v510, %v507
  %v700 = vpack.c.b16 %v514, %v511
  %v701 = vpack.c.b16 %v515, %v512
  %v702 = vpack.c.b16 %v516, %v513
  %v703 = vpack.c.b16 %v520, %v517
  %v704 = vpack.c.b16 %v521, %v518
  %v705 = vpack.c.b16 %v522, %v519
  %v706 = vpack.c.b16 %v526, %v523
  %v707 = vpack.c.b16 %v527, %v524
  %v708 = vpack.c.b16 %v528, %v525
  %v709 = vpack.c.b16 %v532, %v529
  %v710 = vpack.c.b16 %v533, %v530
  %v711 = vpack.c.b16 %v534, %v531
  %v712 = vpack.c.b16 %v538, %v535
  %v713 = vpack.c.b16 %v539, %v536
  %v714 = vpack.c.b16 %v540, %v537
  %v715 = vpack.c.b16 %v544, %v541
  %v716 = vpack.c.b16 %v545, %v542
  %v717 = vpack.c.b16 %v546, %v543
  %v718 = vpack.c.b16 %v550, %v547
  %v719 = vpack.c.b16 %v551, %v548
  %v720 = vpack.c.b16 %v552, %v549
  %v721 = vpack.c.b16 %v556, %v553
  %v722 = vpack.c.b16 %v557, %v554
  %v723 = vpack.c.b16 %v558, %v555
  %v724 = vpack.c.b16 %v562, %v559
  %v725 = vpack.c.b16 %v563, %v560
  %v726 = vpack.c.b16 %v564, %v561
  %v727 = vpack.c.b16 %v568, %v565
  %v728 = vpack.c.b16 %v569, %v566
  %v729 = vpack.c.b16 %v570, %v567
  %v730 = vpack.c.b16 %v574, %v571
  %v731 = vpack.c.b16 %v575, %v572
  %v732 = vpack.c.b16 %v576, %v573
  %v733 = vpack.c.b16 %v580, %v577
  %v734 = vpack.c.b16 %v581, %v578
  %v735 = vpack.c.b16 %v582, %v579
  %v736 = vpack.c.b16 %v586, %v583
  %v737 = vpack.c.b16 %v587, %v584
  %v738 = vpack.c.b16 %v588, %v585
  %v739 = vpack.c.b16 %v592, %v589
  %v740 = vpack.c.b16 %v593, %v590
  %v741 = vpack.c.b16 %v594, %v591
  %v742 = vpack.c.b16 %v598, %v595
  %v743 = vpack.c.b16 %v599, %v596
  %v744 = vpack.c.b16 %v600, %v597
  %v745 = vpack.c.b16 %v604, %v601
  %v746 = vpack.c.b16 %v605, %v602
  %v747 = vpack.c.b16 %v606, %v603
  %v748 = vpack.c.b16 %v610, %v607
  %v749 = vpack.c.b16 %v611, %v608
  %v750 = vpack.c.b16 %v612, %v609
  %v751 = vpack.c.b16 %v616, %v613
  %v752 = vpack.c.b16 %v617, %v614
  %v753 = vpack.c.b16 %v618, %v615
  %v754 = vpack.c.b16 %v622, %v619
  %v755 = vpack.c.b16 %v623, %v620
  %v756 = vpack.c.b16 %v624, %v621
  %v757 = vpack.c.b16 %v628, %v625
  %v758 = vpack.c.b16 %v629, %v626
  %v759 = vpack.c.b16 %v630, %v627
  %v760 = vpack.c.b16 %v634, %v631
  %v761 = vpack.c.b16 %v635, %v632
  %v762 = vpack.c.b16 %v636, %v633
  %v763 = vpack.c.b16 %v640, %v637
  %v764 = vpack.c.b16 %v641, %v638
  %v765 = vpack.c.b16 %v642, %v639
  %v766 = vpack.c.b16 %v646, %v643
  %v767 = vpack.c.b16 %v647, %v644
  %v768 = vpack.c.b16 %v648, %v645
  %889 = vmatpush.bf16.msra.mxu0 %v670
  %890 = vmatpush.bf16.msra.mxu0 %v667
  %891 = vmatpush.bf16.msra.mxu0 %v664
  %892 = vmatpush.bf16.msra.mxu0 %v661
  %893 = vmatpush.bf16.msra.mxu0 %v658
  %894 = vmatpush.bf16.msra.mxu0 %v655
  %895 = vmatpush.bf16.msra.mxu0 %v652
  %896 = vmatpush.bf16.msra.mxu0 %v649
  %897 = vmatmul.bf16.gmra.mxu0 %v229
  %v898 = vpop.f32.mrf.mxu0
  %v899 = vadd.f32 %v191, %v898
  %v900 = vpop.f32.mrf.mxu0
  %v901 = vadd.f32 %v191, %v900
  %902 = vmatmul.bf16.gmra.mxu0 %v234
  %v903 = vpop.f32.mrf.mxu0
  %v904 = vadd.f32 %v191, %v903
  %v905 = vpop.f32.mrf.mxu0
  %v906 = vadd.f32 %v191, %v905
  %907 = vdwg.mxu0
  %908 = vmatpush.bf16.msra.mxu0 %v694
  %909 = vmatpush.bf16.msra.mxu0 %v691
  %910 = vmatpush.bf16.msra.mxu0 %v688
  %911 = vmatpush.bf16.msra.mxu0 %v685
  %912 = vmatpush.bf16.msra.mxu0 %v682
  %913 = vmatpush.bf16.msra.mxu0 %v679
  %914 = vmatpush.bf16.msra.mxu0 %v676
  %915 = vmatpush.bf16.msra.mxu0 %v673
  %916 = vmatmul.bf16.gmra.mxu0 %v230
  %v917 = vpop.f32.mrf.mxu0
  %v918 = vadd.f32 %v899, %v917
  %v919 = vpop.f32.mrf.mxu0
  %v920 = vadd.f32 %v901, %v919
  %921 = vmatmul.bf16.gmra.mxu0 %v235
  %v922 = vpop.f32.mrf.mxu0
  %v923 = vadd.f32 %v904, %v922
  %v924 = vpop.f32.mrf.mxu0
  %v925 = vadd.f32 %v906, %v924
  %926 = vdwg.mxu0
  %927 = vmatpush.bf16.msra.mxu0 %v718
  %928 = vmatpush.bf16.msra.mxu0 %v715
  %929 = vmatpush.bf16.msra.mxu0 %v712
  %930 = vmatpush.bf16.msra.mxu0 %v709
  %931 = vmatpush.bf16.msra.mxu0 %v706
  %932 = vmatpush.bf16.msra.mxu0 %v703
  %933 = vmatpush.bf16.msra.mxu0 %v700
  %934 = vmatpush.bf16.msra.mxu0 %v697
  %935 = vmatmul.bf16.gmra.mxu0 %v231
  %v936 = vpop.f32.mrf.mxu0
  %v937 = vadd.f32 %v918, %v936
  %v938 = vpop.f32.mrf.mxu0
  %v939 = vadd.f32 %v920, %v938
  %940 = vmatmul.bf16.gmra.mxu0 %v236
  %v941 = vpop.f32.mrf.mxu0
  %v942 = vadd.f32 %v923, %v941
  %v943 = vpop.f32.mrf.mxu0
  %v944 = vadd.f32 %v925, %v943
  %945 = vdwg.mxu0
  %946 = vmatpush.bf16.msra.mxu0 %v742
  %947 = vmatpush.bf16.msra.mxu0 %v739
  %948 = vmatpush.bf16.msra.mxu0 %v736
  %949 = vmatpush.bf16.msra.mxu0 %v733
  %950 = vmatpush.bf16.msra.mxu0 %v730
  %951 = vmatpush.bf16.msra.mxu0 %v727
  %952 = vmatpush.bf16.msra.mxu0 %v724
  %953 = vmatpush.bf16.msra.mxu0 %v721
  %954 = vmatmul.bf16.gmra.mxu0 %v232
  %v955 = vpop.f32.mrf.mxu0
  %v956 = vadd.f32 %v937, %v955
  %v957 = vpop.f32.mrf.mxu0
  %v958 = vadd.f32 %v939, %v957
  %959 = vmatmul.bf16.gmra.mxu0 %v237
  %v960 = vpop.f32.mrf.mxu0
  %v961 = vadd.f32 %v942, %v960
  %v962 = vpop.f32.mrf.mxu0
  %v963 = vadd.f32 %v944, %v962
  %964 = vdwg.mxu0
  %965 = vmatpush.bf16.msra.mxu0 %v766
  %966 = vmatpush.bf16.msra.mxu0 %v763
  %967 = vmatpush.bf16.msra.mxu0 %v760
  %968 = vmatpush.bf16.msra.mxu0 %v757
  %969 = vmatpush.bf16.msra.mxu0 %v754
  %970 = vmatpush.bf16.msra.mxu0 %v751
  %971 = vmatpush.bf16.msra.mxu0 %v748
  %972 = vmatpush.bf16.msra.mxu0 %v745
  %973 = vmatmul.bf16.gmra.mxu0 %v233
  %v974 = vpop.f32.mrf.mxu0
  %v975 = vadd.f32 %v956, %v974
  %v976 = vpop.f32.mrf.mxu0
  %v977 = vadd.f32 %v958, %v976
  %978 = vmatmul.bf16.gmra.mxu0 %v238
  %v979 = vpop.f32.mrf.mxu0
  %v980 = vadd.f32 %v961, %v979
  %v981 = vpop.f32.mrf.mxu0
  %v982 = vadd.f32 %v963, %v981
  %983 = vdwg.mxu0
  %984 = vmatpush.bf16.msra.mxu0 %v671
  %985 = vmatpush.bf16.msra.mxu0 %v668
  %986 = vmatpush.bf16.msra.mxu0 %v665
  %987 = vmatpush.bf16.msra.mxu0 %v662
  %988 = vmatpush.bf16.msra.mxu0 %v659
  %989 = vmatpush.bf16.msra.mxu0 %v656
  %990 = vmatpush.bf16.msra.mxu0 %v653
  %991 = vmatpush.bf16.msra.mxu0 %v650
  %992 = vmatmul.bf16.gmra.mxu0 %v229
  %v993 = vpop.f32.mrf.mxu0
  %v994 = vadd.f32 %v192, %v993
  %v995 = vpop.f32.mrf.mxu0
  %v996 = vadd.f32 %v192, %v995
  %997 = vmatmul.bf16.gmra.mxu0 %v234
  %v998 = vpop.f32.mrf.mxu0
  %v999 = vadd.f32 %v192, %v998
  %v1000 = vpop.f32.mrf.mxu0
  %v1001 = vadd.f32 %v192, %v1000
  %1002 = vdwg.mxu0
  %1003 = vmatpush.bf16.msra.mxu0 %v695
  %1004 = vmatpush.bf16.msra.mxu0 %v692
  %1005 = vmatpush.bf16.msra.mxu0 %v689
  %1006 = vmatpush.bf16.msra.mxu0 %v686
  %1007 = vmatpush.bf16.msra.mxu0 %v683
  %1008 = vmatpush.bf16.msra.mxu0 %v680
  %1009 = vmatpush.bf16.msra.mxu0 %v677
  %1010 = vmatpush.bf16.msra.mxu0 %v674
  %1011 = vmatmul.bf16.gmra.mxu0 %v230
  %v1012 = vpop.f32.mrf.mxu0
  %v1013 = vadd.f32 %v994, %v1012
  %v1014 = vpop.f32.mrf.mxu0
  %v1015 = vadd.f32 %v996, %v1014
  %1016 = vmatmul.bf16.gmra.mxu0 %v235
  %v1017 = vpop.f32.mrf.mxu0
  %v1018 = vadd.f32 %v999, %v1017
  %v1019 = vpop.f32.mrf.mxu0
  %v1020 = vadd.f32 %v1001, %v1019
  %1021 = vdwg.mxu0
  %1022 = vmatpush.bf16.msra.mxu0 %v719
  %1023 = vmatpush.bf16.msra.mxu0 %v716
  %1024 = vmatpush.bf16.msra.mxu0 %v713
  %1025 = vmatpush.bf16.msra.mxu0 %v710
  %1026 = vmatpush.bf16.msra.mxu0 %v707
  %1027 = vmatpush.bf16.msra.mxu0 %v704
  %1028 = vmatpush.bf16.msra.mxu0 %v701
  %1029 = vmatpush.bf16.msra.mxu0 %v698
  %1030 = vmatmul.bf16.gmra.mxu0 %v231
  %v1031 = vpop.f32.mrf.mxu0
  %v1032 = vadd.f32 %v1013, %v1031
  %v1033 = vpop.f32.mrf.mxu0
  %v1034 = vadd.f32 %v1015, %v1033
  %1035 = vmatmul.bf16.gmra.mxu0 %v236
  %v1036 = vpop.f32.mrf.mxu0
  %v1037 = vadd.f32 %v1018, %v1036
  %v1038 = vpop.f32.mrf.mxu0
  %v1039 = vadd.f32 %v1020, %v1038
  %1040 = vdwg.mxu0
  %1041 = vmatpush.bf16.msra.mxu0 %v743
  %1042 = vmatpush.bf16.msra.mxu0 %v740
  %1043 = vmatpush.bf16.msra.mxu0 %v737
  %1044 = vmatpush.bf16.msra.mxu0 %v734
  %1045 = vmatpush.bf16.msra.mxu0 %v731
  %1046 = vmatpush.bf16.msra.mxu0 %v728
  %1047 = vmatpush.bf16.msra.mxu0 %v725
  %1048 = vmatpush.bf16.msra.mxu0 %v722
  %1049 = vmatmul.bf16.gmra.mxu0 %v232
  %v1050 = vpop.f32.mrf.mxu0
  %v1051 = vadd.f32 %v1032, %v1050
  %v1052 = vpop.f32.mrf.mxu0
  %v1053 = vadd.f32 %v1034, %v1052
  %1054 = vmatmul.bf16.gmra.mxu0 %v237
  %v1055 = vpop.f32.mrf.mxu0
  %v1056 = vadd.f32 %v1037, %v1055
  %v1057 = vpop.f32.mrf.mxu0
  %v1058 = vadd.f32 %v1039, %v1057
  %1059 = vdwg.mxu0
  %1060 = vmatpush.bf16.msra.mxu0 %v767
  %1061 = vmatpush.bf16.msra.mxu0 %v764
  %1062 = vmatpush.bf16.msra.mxu0 %v761
  %1063 = vmatpush.bf16.msra.mxu0 %v758
  %1064 = vmatpush.bf16.msra.mxu0 %v755
  %1065 = vmatpush.bf16.msra.mxu0 %v752
  %1066 = vmatpush.bf16.msra.mxu0 %v749
  %1067 = vmatpush.bf16.msra.mxu0 %v746
  %1068 = vmatmul.bf16.gmra.mxu0 %v233
  %v1069 = vpop.f32.mrf.mxu0
  %v1070 = vadd.f32 %v1051, %v1069
  %v1071 = vpop.f32.mrf.mxu0
  %v1072 = vadd.f32 %v1053, %v1071
  %1073 = vmatmul.bf16.gmra.mxu0 %v238
  %v1074 = vpop.f32.mrf.mxu0
  %v1075 = vadd.f32 %v1056, %v1074
  %v1076 = vpop.f32.mrf.mxu0
  %v1077 = vadd.f32 %v1058, %v1076
  %1078 = vdwg.mxu0
  %1079 = vmatpush.bf16.msra.mxu0 %v672
  %1080 = vmatpush.bf16.msra.mxu0 %v669
  %1081 = vmatpush.bf16.msra.mxu0 %v666
  %1082 = vmatpush.bf16.msra.mxu0 %v663
  %1083 = vmatpush.bf16.msra.mxu0 %v660
  %1084 = vmatpush.bf16.msra.mxu0 %v657
  %1085 = vmatpush.bf16.msra.mxu0 %v654
  %1086 = vmatpush.bf16.msra.mxu0 %v651
  %1087 = vmatmul.bf16.gmra.mxu0 %v229
  %v1088 = vpop.f32.mrf.mxu0
  %v1089 = vadd.f32 %v193, %v1088
  %v1090 = vpop.f32.mrf.mxu0
  %v1091 = vadd.f32 %v193, %v1090
  %1092 = vmatmul.bf16.gmra.mxu0 %v234
  %v1093 = vpop.f32.mrf.mxu0
  %v1094 = vadd.f32 %v193, %v1093
  %v1095 = vpop.f32.mrf.mxu0
  %v1096 = vadd.f32 %v193, %v1095
  %1097 = vdwg.mxu0
  %1098 = vmatpush.bf16.msra.mxu0 %v696
  %1099 = vmatpush.bf16.msra.mxu0 %v693
  %1100 = vmatpush.bf16.msra.mxu0 %v690
  %1101 = vmatpush.bf16.msra.mxu0 %v687
  %1102 = vmatpush.bf16.msra.mxu0 %v684
  %1103 = vmatpush.bf16.msra.mxu0 %v681
  %1104 = vmatpush.bf16.msra.mxu0 %v678
  %1105 = vmatpush.bf16.msra.mxu0 %v675
  %1106 = vmatmul.bf16.gmra.mxu0 %v230
  %v1107 = vpop.f32.mrf.mxu0
  %v1108 = vadd.f32 %v1089, %v1107
  %v1109 = vpop.f32.mrf.mxu0
  %v1110 = vadd.f32 %v1091, %v1109
  %1111 = vmatmul.bf16.gmra.mxu0 %v235
  %v1112 = vpop.f32.mrf.mxu0
  %v1113 = vadd.f32 %v1094, %v1112
  %v1114 = vpop.f32.mrf.mxu0
  %v1115 = vadd.f32 %v1096, %v1114
  %1116 = vdwg.mxu0
  %1117 = vmatpush.bf16.msra.mxu0 %v720
  %1118 = vmatpush.bf16.msra.mxu0 %v717
  %1119 = vmatpush.bf16.msra.mxu0 %v714
  %1120 = vmatpush.bf16.msra.mxu0 %v711
  %1121 = vmatpush.bf16.msra.mxu0 %v708
  %1122 = vmatpush.bf16.msra.mxu0 %v705
  %1123 = vmatpush.bf16.msra.mxu0 %v702
  %1124 = vmatpush.bf16.msra.mxu0 %v699
  %1125 = vmatmul.bf16.gmra.mxu0 %v231
  %v1126 = vpop.f32.mrf.mxu0
  %v1127 = vadd.f32 %v1108, %v1126
  %v1128 = vpop.f32.mrf.mxu0
  %v1129 = vadd.f32 %v1110, %v1128
  %1130 = vmatmul.bf16.gmra.mxu0 %v236
  %v1131 = vpop.f32.mrf.mxu0
  %v1132 = vadd.f32 %v1113, %v1131
  %v1133 = vpop.f32.mrf.mxu0
  %v1134 = vadd.f32 %v1115, %v1133
  %1135 = vdwg.mxu0
  %1136 = vmatpush.bf16.msra.mxu0 %v744
  %1137 = vmatpush.bf16.msra.mxu0 %v741
  %1138 = vmatpush.bf16.msra.mxu0 %v738
  %1139 = vmatpush.bf16.msra.mxu0 %v735
  %1140 = vmatpush.bf16.msra.mxu0 %v732
  %1141 = vmatpush.bf16.msra.mxu0 %v729
  %1142 = vmatpush.bf16.msra.mxu0 %v726
  %1143 = vmatpush.bf16.msra.mxu0 %v723
  %1144 = vmatmul.bf16.gmra.mxu0 %v232
  %v1145 = vpop.f32.mrf.mxu0
  %v1146 = vadd.f32 %v1127, %v1145
  %v1147 = vpop.f32.mrf.mxu0
  %v1148 = vadd.f32 %v1129, %v1147
  %1149 = vmatmul.bf16.gmra.mxu0 %v237
  %v1150 = vpop.f32.mrf.mxu0
  %v1151 = vadd.f32 %v1132, %v1150
  %v1152 = vpop.f32.mrf.mxu0
  %v1153 = vadd.f32 %v1134, %v1152
  %1154 = vdwg.mxu0
  %1155 = vmatpush.bf16.msra.mxu0 %v768
  %1156 = vmatpush.bf16.msra.mxu0 %v765
  %1157 = vmatpush.bf16.msra.mxu0 %v762
  %1158 = vmatpush.bf16.msra.mxu0 %v759
  %1159 = vmatpush.bf16.msra.mxu0 %v756
  %1160 = vmatpush.bf16.msra.mxu0 %v753
  %1161 = vmatpush.bf16.msra.mxu0 %v750
  %1162 = vmatpush.bf16.msra.mxu0 %v747
  %1163 = vmatmul.bf16.gmra.mxu0 %v233
  %v1164 = vpop.f32.mrf.mxu0
  %v1165 = vadd.f32 %v1146, %v1164
  %v1166 = vpop.f32.mrf.mxu0
  %v1167 = vadd.f32 %v1148, %v1166
  %1168 = vmatmul.bf16.gmra.mxu0 %v238
  %v1169 = vpop.f32.mrf.mxu0
  %v1170 = vadd.f32 %v1151, %v1169
  %v1171 = vpop.f32.mrf.mxu0
  %v1172 = vadd.f32 %v1153, %v1171
  %1173 = vdwg.mxu0
  %v1174 = vmax.f32 %v975, 0.0
  %v1175 = vmax.f32 %v1070, 0.0
  %v1176 = vmax.f32 %v1165, 0.0
  %v1177 = vmax.f32 %v977, 0.0
  %v1178 = vmax.f32 %v1072, 0.0
  %v1179 = vmax.f32 %v1167, 0.0
  %v1180 = vmax.f32 %v980, 0.0
  %v1181 = vmax.f32 %v1075, 0.0
  %v1182 = vmax.f32 %v1170, 0.0
  %v1183 = vmax.f32 %v982, 0.0
  %v1184 = vmax.f32 %v1077, 0.0
  %v1185 = vmax.f32 %v1172, 0.0
  %v1186 = vpack.c.bf16 %v1177, %v1174
  %v1187 = vpack.c.bf16 %v1178, %v1175
  %v1188 = vpack.c.bf16 %v1179, %v1176
  %v1189 = vpack.c.bf16 %v1183, %v1180
  %v1190 = vpack.c.bf16 %v1184, %v1181
  %v1191 = vpack.c.bf16 %v1185, %v1182
  %v1192 = vld [vmem:[%s2] sm:$0xf]
  %v1193 = vld [vmem:[%s2 + $0x4] sm:$0xf]
  %v1194 = vld [vmem:[%s2 + $0x8] sm:$0xf]
  %v1195 = vld [vmem:[%s2 + $0xc] sm:$0xf]
  %v1196 = vld [vmem:[%s2 + $0x10] sm:$0xf]
  %v1197 = vld [vmem:[%s2 + $0x14] sm:$0xf]
  %v1198 = vld [vmem:[%s2 + $0x18] sm:$0xf]
  %v1199 = vld [vmem:[%s2 + $0x1c] sm:$0xf]
  %v1200 = vld [vmem:[%s2 + $0x20] sm:$0xf]
  %v1201 = vld [vmem:[%s2 + $0x24] sm:$0xf]
  %v1202 = vld [vmem:[%s2 + $0x28] sm:$0xf]
  %v1203 = vld [vmem:[%s2 + $0x2c] sm:$0xf]
  %v1204 = vld [vmem:[%s2 + $0x30] sm:$0xf]
  %v1205 = vld [vmem:[%s2 + $0x34] sm:$0xf]
  %v1206 = vld [vmem:[%s2 + $0x38] sm:$0xf]
  %v1207 = vld [vmem:[%s2 + $0x3c] sm:$0xf]
  %v1208 = vld [vmem:[%s2 + $0x40] sm:$0xf]
  %v1209 = vld [vmem:[%s2 + $0x44] sm:$0xf]
  %v1210 = vld [vmem:[%s2 + $0x48] sm:$0xf]
  %v1211 = vld [vmem:[%s2 + $0x4c] sm:$0xf]
  %v1212 = vld [vmem:[%s2 + $0x50] sm:$0xf]
  %v1213 = vld [vmem:[%s2 + $0x54] sm:$0xf]
  %v1214 = vld [vmem:[%s2 + $0x58] sm:$0xf]
  %v1215 = vld [vmem:[%s2 + $0x5c] sm:$0xf]
  %v1216 = vld [vmem:[%s2 + $0x60] sm:$0xf]
  %v1217 = vld [vmem:[%s2 + $0x64] sm:$0xf]
  %v1218 = vld [vmem:[%s2 + $0x68] sm:$0xf]
  %v1219 = vld [vmem:[%s2 + $0x6c] sm:$0xf]
  %v1220 = vld [vmem:[%s2 + $0x70] sm:$0xf]
  %v1221 = vld [vmem:[%s2 + $0x74] sm:$0xf]
  %v1222 = vld [vmem:[%s2 + $0x78] sm:$0xf]
  %v1223 = vld [vmem:[%s2 + $0x7c] sm:$0xf]
  %v1224 = vld [vmem:[%s2 + $0x80] sm:$0xf]
  %v1225 = vld [vmem:[%s2 + $0x84] sm:$0xf]
  %v1226 = vld [vmem:[%s2 + $0x88] sm:$0xf]
  %v1227 = vld [vmem:[%s2 + $0x8c] sm:$0xf]
  %v1228 = vld [vmem:[%s2 + $0x90] sm:$0xf]
  %v1229 = vld [vmem:[%s2 + $0x94] sm:$0xf]
  %v1230 = vld [vmem:[%s2 + $0x98] sm:$0xf]
  %v1231 = vld [vmem:[%s2 + $0x9c] sm:$0xf]
  %v1232 = vld [vmem:[%s2 + $0xa0] sm:$0xf]
  %v1233 = vld [vmem:[%s2 + $0xa4] sm:$0xf]
  %v1234 = vld [vmem:[%s2 + $0xa8] sm:$0xf]
  %v1235 = vld [vmem:[%s2 + $0xac] sm:$0xf]
  %v1236 = vld [vmem:[%s2 + $0xb0] sm:$0xf]
  %v1237 = vld [vmem:[%s2 + $0xb4] sm:$0xf]
  %v1238 = vld [vmem:[%s2 + $0xb8] sm:$0xf]
  %v1239 = vld [vmem:[%s2 + $0xbc] sm:$0xf]
  %v1240 = vld [vmem:[%s3 + $0x3] sm:$0x1]
  %v1242 = vperm.slane %v1240, 0
  %v1292 = vunpack.c.l.b16 %v1192
  %v1293 = vunpack.c.l.b16 %v1193
  %v1294 = vunpack.c.l.b16 %v1194
  %v1295 = vunpack.c.l.b16 %v1195
  %v1296 = vunpack.c.l.b16 %v1196
  %v1297 = vunpack.c.l.b16 %v1197
  %v1298 = vunpack.c.l.b16 %v1198
  %v1299 = vunpack.c.l.b16 %v1199
  %v1300 = vunpack.c.l.b16 %v1200
  %v1301 = vunpack.c.l.b16 %v1201
  %v1302 = vunpack.c.l.b16 %v1202
  %v1303 = vunpack.c.l.b16 %v1203
  %v1304 = vunpack.c.l.b16 %v1204
  %v1305 = vunpack.c.l.b16 %v1205
  %v1306 = vunpack.c.l.b16 %v1206
  %v1307 = vunpack.c.l.b16 %v1207
  %v1308 = vunpack.c.l.b16 %v1208
  %v1309 = vunpack.c.l.b16 %v1209
  %v1310 = vunpack.c.l.b16 %v1210
  %v1311 = vunpack.c.l.b16 %v1211
  %v1312 = vunpack.c.l.b16 %v1212
  %v1313 = vunpack.c.l.b16 %v1213
  %v1314 = vunpack.c.l.b16 %v1214
  %v1315 = vunpack.c.l.b16 %v1215
  %v1316 = vunpack.c.l.b16 %v1216
  %v1317 = vunpack.c.l.b16 %v1217
  %v1318 = vunpack.c.l.b16 %v1218
  %v1319 = vunpack.c.l.b16 %v1219
  %v1320 = vunpack.c.l.b16 %v1220
  %v1321 = vunpack.c.l.b16 %v1221
  %v1322 = vunpack.c.l.b16 %v1222
  %v1323 = vunpack.c.l.b16 %v1223
  %v1324 = vunpack.c.l.b16 %v1224
  %v1325 = vunpack.c.l.b16 %v1225
  %v1326 = vunpack.c.l.b16 %v1226
  %v1327 = vunpack.c.l.b16 %v1227
  %v1328 = vunpack.c.l.b16 %v1228
  %v1329 = vunpack.c.l.b16 %v1229
  %v1330 = vunpack.c.l.b16 %v1230
  %v1331 = vunpack.c.l.b16 %v1231
  %v1332 = vunpack.c.l.b16 %v1232
  %v1333 = vunpack.c.l.b16 %v1233
  %v1334 = vunpack.c.l.b16 %v1234
  %v1335 = vunpack.c.l.b16 %v1235
  %v1336 = vunpack.c.l.b16 %v1236
  %v1337 = vunpack.c.l.b16 %v1237
  %v1338 = vunpack.c.l.b16 %v1238
  %v1339 = vunpack.c.l.b16 %v1239
  %v1340 = vpack.c.b16 %v1293, %v1292
  %v1341 = vpack.c.b16 %v1295, %v1294
  %v1342 = vpack.c.b16 %v1297, %v1296
  %v1343 = vpack.c.b16 %v1299, %v1298
  %v1344 = vpack.c.b16 %v1301, %v1300
  %v1345 = vpack.c.b16 %v1303, %v1302
  %v1346 = vpack.c.b16 %v1305, %v1304
  %v1347 = vpack.c.b16 %v1307, %v1306
  %v1348 = vpack.c.b16 %v1309, %v1308
  %v1349 = vpack.c.b16 %v1311, %v1310
  %v1350 = vpack.c.b16 %v1313, %v1312
  %v1351 = vpack.c.b16 %v1315, %v1314
  %v1352 = vpack.c.b16 %v1317, %v1316
  %v1353 = vpack.c.b16 %v1319, %v1318
  %v1354 = vpack.c.b16 %v1321, %v1320
  %v1355 = vpack.c.b16 %v1323, %v1322
  %v1356 = vpack.c.b16 %v1325, %v1324
  %v1357 = vpack.c.b16 %v1327, %v1326
  %v1358 = vpack.c.b16 %v1329, %v1328
  %v1359 = vpack.c.b16 %v1331, %v1330
  %v1360 = vpack.c.b16 %v1333, %v1332
  %v1361 = vpack.c.b16 %v1335, %v1334
  %v1362 = vpack.c.b16 %v1337, %v1336
  %v1363 = vpack.c.b16 %v1339, %v1338
  %1388 = vmatpush.bf16.msra.mxu0 %v1347
  %1389 = vmatpush.bf16.msra.mxu0 %v1346
  %1390 = vmatpush.bf16.msra.mxu0 %v1345
  %1391 = vmatpush.bf16.msra.mxu0 %v1344
  %1392 = vmatpush.bf16.msra.mxu0 %v1343
  %1393 = vmatpush.bf16.msra.mxu0 %v1342
  %1394 = vmatpush.bf16.msra.mxu0 %v1341
  %1395 = vmatpush.bf16.msra.mxu0 %v1340
  %1396 = vmatmul.bf16.gmra.mxu0 %v1186
  %v1397 = vpop.f32.mrf.mxu0
  %v1398 = vadd.f32 %v1242, %v1397
  %v1399 = vpop.f32.mrf.mxu0
  %v1400 = vadd.f32 %v1242, %v1399
  %1401 = vmatmul.bf16.gmra.mxu0 %v1189
  %v1402 = vpop.f32.mrf.mxu0
  %v1403 = vadd.f32 %v1242, %v1402
  %v1404 = vpop.f32.mrf.mxu0
  %v1405 = vadd.f32 %v1242, %v1404
  %1406 = vdwg.mxu0
  %1407 = vmatpush.bf16.msra.mxu0 %v1355
  %1408 = vmatpush.bf16.msra.mxu0 %v1354
  %1409 = vmatpush.bf16.msra.mxu0 %v1353
  %1410 = vmatpush.bf16.msra.mxu0 %v1352
  %1411 = vmatpush.bf16.msra.mxu0 %v1351
  %1412 = vmatpush.bf16.msra.mxu0 %v1350
  %1413 = vmatpush.bf16.msra.mxu0 %v1349
  %1414 = vmatpush.bf16.msra.mxu0 %v1348
  %1415 = vmatmul.bf16.gmra.mxu0 %v1187
  %v1416 = vpop.f32.mrf.mxu0
  %v1417 = vadd.f32 %v1398, %v1416
  %v1418 = vpop.f32.mrf.mxu0
  %v1419 = vadd.f32 %v1400, %v1418
  %1420 = vmatmul.bf16.gmra.mxu0 %v1190
  %v1421 = vpop.f32.mrf.mxu0
  %v1422 = vadd.f32 %v1403, %v1421
  %v1423 = vpop.f32.mrf.mxu0
  %v1424 = vadd.f32 %v1405, %v1423
  %1425 = vdwg.mxu0
  %1426 = vmatpush.bf16.msra.mxu0 %v1363
  %1427 = vmatpush.bf16.msra.mxu0 %v1362
  %1428 = vmatpush.bf16.msra.mxu0 %v1361
  %1429 = vmatpush.bf16.msra.mxu0 %v1360
  %1430 = vmatpush.bf16.msra.mxu0 %v1359
  %1431 = vmatpush.bf16.msra.mxu0 %v1358
  %1432 = vmatpush.bf16.msra.mxu0 %v1357
  %1433 = vmatpush.bf16.msra.mxu0 %v1356
  %1434 = vmatmul.bf16.gmra.mxu0 %v1188
  %v1435 = vpop.f32.mrf.mxu0
  %v1436 = vadd.f32 %v1417, %v1435
  %v1437 = vpop.f32.mrf.mxu0
  %v1438 = vadd.f32 %v1419, %v1437
  %1439 = vmatmul.bf16.gmra.mxu0 %v1191
  %v1440 = vpop.f32.mrf.mxu0
  %v1441 = vadd.f32 %v1422, %v1440
  %v1442 = vpop.f32.mrf.mxu0
  %v1443 = vadd.f32 %v1424, %v1442
  %1444 = vdwg.mxu0
  %1445 = vst [vmem:[%s4] sm:$0xff] %v1436
  %1446 = vst [vmem:[%s4 + $0x8] sm:$0xff] %v1438
  %1447 = vst [vmem:[%s4 + $0x10] sm:$0xff] %v1441
  %1448 = vst [vmem:[%s4 + $0x18] sm:$0xff] %v1443
  // Predicated region
  $region18: #{mlp_decoder_forward.1} parent=0 // pred_check
    _
  $region19: #{mlp_decoder_forward.1} parent=0 // pred_check_branch
    %1450 = sbr.rel (0) target = $region21
  $region20: #{mlp_decoder_forward.1} parent=0 // pred_region
    _
  $region21: #{mlp_decoder_forward.1} parent=0 // pred_fallthru
    _
  // Predicated region
  $region22: #{mlp_decoder_forward.1} parent=0 // pred_check
    _
  $region23: #{mlp_decoder_forward.1} parent=0 // pred_check_branch
    %1452 = sbr.rel (0) target = $region25
  $region24: #{mlp_decoder_forward.1} parent=0 // pred_region
    _
  $region25: #{mlp_decoder_forward.1} parent=0 // pred_fallthru
    _

</llo_original>
